<compile_context>
chip_gen: v5e
topology: v5e:2x2
jax: 0.10.0
libtpu: 0.0.40
codegen_flags: <defaults>
</compile_context>

<pallas_src>
import jax
import jax.numpy as jnp
from jax.experimental import pallas as pl
from jax.experimental.pallas import tpu as pltpu


def _round_up(x, m):
    return ((x + m - 1) // m) * m


def _pad2d(a, rows, cols):
    r, c = a.shape
    if r == rows and c == cols:
        return a
    return jnp.pad(a, ((0, rows - r), (0, cols - c)))


def _tpu_vmem_bytes():
    """Physical VMEM capacity; conservative fallback if the query fails."""
    try:
        return int(pltpu.get_tpu_info().vmem_capacity_bytes)
    except Exception:
        return 64 * 1024 * 1024  # v7x per-TC size: safe lower bound


def _choose_tm(M, dm_p, di_p, operand_bytes, budget):
    """Largest TM (multiple of 16) whose VMEM footprint fits the budget."""
    resident = operand_bytes * 2 * dm_p * di_p + 4 * (dm_p + di_p)  # W1+W2+biases
    m16 = _round_up(max(M, 1), 16)
    tm = 16
    for cand in (2048, 1024, 512, 256, 128, 64, 32, 16):
        if cand > m16:
            continue
        per_tile = 2 * cand * dm_p * operand_bytes   # double-buffered x tile
        per_tile += 2 * cand * dm_p * 4              # double-buffered f32 out tile
        scratch = cand * di_p * 4                    # f32 intermediate scratch
        if resident + per_tile + scratch <= budget:
            tm = cand
            break
    return tm


def _ffn_kernel(x_ref, w1_ref, b1_ref, w2_ref, b2_ref, o_ref, h_ref):
    # linear1 on the MXU with f32 accumulation; bias add in f32; the
    # intermediate is parked in VMEM scratch to bound vreg pressure.
    h_ref[...] = jnp.dot(x_ref[...], w1_ref[...],
                         preferred_element_type=jnp.float32) + b1_ref[...]
    # linear2: cast the intermediate back to the MXU operand dtype.
    y = jnp.dot(h_ref[...].astype(w2_ref.dtype), w2_ref[...],
                preferred_element_type=jnp.float32) + b2_ref[...]
    o_ref[...] = y.astype(o_ref.dtype)


def feed_forward_slice(x, w1, b1, w2, b2, *, compute_dtype=jnp.bfloat16,
                       tile_m=None):
    """FFN of SliceBCEncoder: y = (x @ W1 + b1) @ W2 + b2 on the last dim.

    x: (..., Dm).  w1: (Dm, Di) (pre-transposed vs torch's (out,in)),
    b1: (Di,), w2: (Di, Dm), b2: (Dm,).
    """
    orig_shape = x.shape
    Dm = x.shape[-1]
    Di = w1.shape[1]
    M = 1
    for d in orig_shape[:-1]:
        M *= d

    # Lane-dense padding of the feature dims (exact: zero padding).
    Dm_p = _round_up(Dm, 128)
    Di_p = _round_up(Di, 128)

    # Per-generation VMEM budget -> row-tile size.
    vmem_cap = _tpu_vmem_bytes()
    budget = int(vmem_cap * 0.55)
    cd_bytes = jnp.dtype(compute_dtype).itemsize
    if tile_m is not None:
        tm = max(16, _round_up(int(tile_m), 16))
    else:
        tm = _choose_tm(M, Dm_p, Di_p, cd_bytes, budget)
    M_p = _round_up(max(M, 1), tm)
    grid_m = M_p // tm

    x2d = x.reshape(M, Dm)
    x_p = _pad2d(x2d, M_p, Dm_p).astype(compute_dtype)
    w1_p = _pad2d(w1, Dm_p, Di_p).astype(compute_dtype)
    w2_p = _pad2d(w2, Di_p, Dm_p).astype(compute_dtype)
    b1_p = _pad2d(b1.reshape(1, Di), 1, Di_p).astype(jnp.float32)
    b2_p = _pad2d(b2.reshape(1, Dm), 1, Dm_p).astype(jnp.float32)

    out_dtype = x.dtype
    flops = 4 * M_p * Dm_p * Di_p  # two matmuls, 2*M*K*N each
    bytes_accessed = (x_p.size * x_p.dtype.itemsize
                      + w1_p.size * w1_p.dtype.itemsize
                      + w2_p.size * w2_p.dtype.itemsize
                      + b1_p.size * 4 + b2_p.size * 4
                      + M_p * Dm_p * jnp.dtype(out_dtype).itemsize)

    out = pl.pallas_call(
        _ffn_kernel,
        out_shape=jax.ShapeDtypeStruct((M_p, Dm_p), out_dtype),
        grid_spec=pltpu.PrefetchScalarGridSpec(
            num_scalar_prefetch=0,
            grid=(grid_m,),
            in_specs=[
                pl.BlockSpec((tm, Dm_p), lambda i: (i, 0)),    # x tile walks M
                pl.BlockSpec((Dm_p, Di_p), lambda i: (0, 0)),  # W1 resident
                pl.BlockSpec((1, Di_p), lambda i: (0, 0)),     # b1 resident
                pl.BlockSpec((Di_p, Dm_p), lambda i: (0, 0)),  # W2 resident
                pl.BlockSpec((1, Dm_p), lambda i: (0, 0)),     # b2 resident
            ],
            out_specs=pl.BlockSpec((tm, Dm_p), lambda i: (i, 0)),
            scratch_shapes=[pltpu.VMEM((tm, Di_p), jnp.float32)],
        ),
        compiler_params=pltpu.CompilerParams(
            dimension_semantics=("parallel",),
            vmem_limit_bytes=int(min(vmem_cap * 0.9, 128 * 1024 * 1024)),
        ),
        cost_estimate=pl.CostEstimate(
            flops=int(flops),
            transcendentals=0,
            bytes_accessed=int(bytes_accessed)),
    )(x_p, w1_p, b1_p, w2_p, b2_p)

    return out[:M, :Dm].reshape(orig_shape)


if __name__ == "__main__":
    # SliceBCEncoder's FFN sees x of shape (batch, num_samples, num_channels, dim_model).
    B, NS, NC = 2, 8, 4
    dim_model, dim_inner = 32, 64

    key = jax.random.PRNGKey(0)
    kx, kw1, kb1, kw2, kb2 = jax.random.split(key, 5)

    x = jax.random.normal(kx, (B, NS, NC, dim_model), dtype=jnp.float32)

    # Deterministic parameter init (PyTorch Linear-style uniform bounds),
    # stored pre-transposed relative to torch's (out, in) convention.
    bound1 = 1.0 / (dim_model ** 0.5)
    bound2 = 1.0 / (dim_inner ** 0.5)
    w1 = jax.random.uniform(kw1, (dim_model, dim_inner), jnp.float32, -bound1, bound1)
    b1 = jax.random.uniform(kb1, (dim_inner,), jnp.float32, -bound1, bound1)
    w2 = jax.random.uniform(kw2, (dim_inner, dim_model), jnp.float32, -bound2, bound2)
    b2 = jax.random.uniform(kb2, (dim_model,), jnp.float32, -bound2, bound2)

    # Pure-JAX reference.
    ref = (x.reshape(-1, dim_model) @ w1 + b1) @ w2 + b2
    ref = ref.reshape(x.shape)

    # 1) Default fast path: bf16 MXU operands, f32 accumulation, auto TM.
    y_bf16 = jax.block_until_ready(feed_forward_slice(x, w1, b1, w2, b2))
    assert y_bf16.shape == x.shape
    assert jnp.allclose(y_bf16, ref, atol=5e-2, rtol=5e-2), "bf16 path mismatch"

    # 2) Exact path: f32 operands, TM forced to 48 so the grid has >1 step and
    #    a ragged (zero-padded) last row-tile is exercised.
    y_f32 = jax.block_until_ready(
        feed_forward_slice(x, w1, b1, w2, b2,
                           compute_dtype=jnp.float32, tile_m=48))
    assert y_f32.shape == x.shape
    assert jnp.allclose(y_f32, ref, atol=1e-5, rtol=1e-5), "f32 path mismatch"

    print("KERNEL_OK")
</pallas_src>

<mosaic_0001>
module attributes {stable_mosaic.version = 11 : i64} {
  func.func @_ffn_kernel(%arg0: i32, %arg1: memref<64x128xbf16, #tpu.memory_space<vmem>>, %arg2: memref<128x128xbf16, #tpu.memory_space<vmem>>, %arg3: memref<1x128xf32, #tpu.memory_space<vmem>>, %arg4: memref<128x128xbf16, #tpu.memory_space<vmem>>, %arg5: memref<1x128xf32, #tpu.memory_space<vmem>>, %arg6: memref<64x128xf32, #tpu.memory_space<vmem>>, %arg7: memref<64x128xf32, #tpu.memory_space<vmem>>) attributes {dimension_semantics = [#tpu.dimension_semantics<parallel>], iteration_bounds = array<i64: 1>, scalar_prefetch = 0 : i64, scratch_operands = 1 : i64, tpu.core_type = #tpu.core_type<tc>, window_params = [{transform_indices = @transform_0, window_bounds = array<i64: 64, 128>}, {pipeline_mode = #tpu.pipeline_mode<synchronous>, transform_indices = @transform_1, window_bounds = array<i64: 128, 128>}, {pipeline_mode = #tpu.pipeline_mode<synchronous>, transform_indices = @transform_2, window_bounds = array<i64: 1, 128>}, {pipeline_mode = #tpu.pipeline_mode<synchronous>, transform_indices = @transform_3, window_bounds = array<i64: 128, 128>}, {pipeline_mode = #tpu.pipeline_mode<synchronous>, transform_indices = @transform_4, window_bounds = array<i64: 1, 128>}, {transform_indices = @transform_5, window_bounds = array<i64: 64, 128>}]} {
    %c0 = arith.constant 0 : index
    %c0_0 = arith.constant 0 : index
    %0 = vector.load %arg1[%c0, %c0_0] : memref<64x128xbf16, #tpu.memory_space<vmem>>, vector<64x128xbf16>
    %c0_1 = arith.constant 0 : index
    %c0_2 = arith.constant 0 : index
    %1 = vector.load %arg2[%c0_1, %c0_2] : memref<128x128xbf16, #tpu.memory_space<vmem>>, vector<128x128xbf16>
    %cst = arith.constant dense<0.000000e+00> : vector<64x128xf32>
    %2 = tpu.matmul %0, %1, %cst {dimension_numbers = #tpu.dot_dimension_numbers<[1], [0], [0], [1], [0, 0, 1, 1], [], []>} : vector<64x128xbf16>, vector<128x128xbf16>, vector<64x128xf32> -> vector<64x128xf32>
    %c0_3 = arith.constant 0 : index
    %c0_4 = arith.constant 0 : index
    %3 = vector.load %arg3[%c0_3, %c0_4] : memref<1x128xf32, #tpu.memory_space<vmem>>, vector<1x128xf32>
    %4 = vector.broadcast %3 : vector<1x128xf32> to vector<64x128xf32>
    %5 = arith.addf %2, %4 : vector<64x128xf32>
    %c0_5 = arith.constant 0 : index
    %c0_6 = arith.constant 0 : index
    %6 = vector.load %arg7[%c0_5, %c0_6] : memref<64x128xf32, #tpu.memory_space<vmem>>, vector<64x128xf32>
    tpu.vector_store %arg7[%c0_5, %c0_6], %5 {strides = array<i32>} : memref<64x128xf32, #tpu.memory_space<vmem>>, vector<64x128xf32>,
    %c0_7 = arith.constant 0 : index
    %c0_8 = arith.constant 0 : index
    %7 = vector.load %arg7[%c0_7, %c0_8] : memref<64x128xf32, #tpu.memory_space<vmem>>, vector<64x128xf32>
    %8 = arith.truncf %7 : vector<64x128xf32> to vector<64x128xbf16>
    %c0_9 = arith.constant 0 : index
    %c0_10 = arith.constant 0 : index
    %9 = vector.load %arg4[%c0_9, %c0_10] : memref<128x128xbf16, #tpu.memory_space<vmem>>, vector<128x128xbf16>
    %cst_11 = arith.constant dense<0.000000e+00> : vector<64x128xf32>
    %10 = tpu.matmul %8, %9, %cst_11 {dimension_numbers = #tpu.dot_dimension_numbers<[1], [0], [0], [1], [0, 0, 1, 1], [], []>} : vector<64x128xbf16>, vector<128x128xbf16>, vector<64x128xf32> -> vector<64x128xf32>
    %c0_12 = arith.constant 0 : index
    %c0_13 = arith.constant 0 : index
    %11 = vector.load %arg5[%c0_12, %c0_13] : memref<1x128xf32, #tpu.memory_space<vmem>>, vector<1x128xf32>
    %12 = vector.broadcast %11 : vector<1x128xf32> to vector<64x128xf32>
    %13 = arith.addf %10, %12 : vector<64x128xf32>
    %c0_14 = arith.constant 0 : index
    %c0_15 = arith.constant 0 : index
    %14 = vector.load %arg6[%c0_14, %c0_15] : memref<64x128xf32, #tpu.memory_space<vmem>>, vector<64x128xf32>
    tpu.vector_store %arg6[%c0_14, %c0_15], %13 {strides = array<i32>} : memref<64x128xf32, #tpu.memory_space<vmem>>, vector<64x128xf32>,
    return
  }
  func.func @transform_0(%arg0: i32) -> (i32, i32) {
    %c0_i32 = arith.constant 0 : i32
    %c0_i32_0 = arith.constant 0 : i32
    return %arg0, %c0_i32 : i32, i32
  }
  func.func @transform_1(%arg0: i32) -> (i32, i32) {
    %c0_i32 = arith.constant 0 : i32
    %c0_i32_0 = arith.constant 0 : i32
    %c0_i32_1 = arith.constant 0 : i32
    return %c0_i32, %c0_i32_0 : i32, i32
  }
  func.func @transform_2(%arg0: i32) -> (i32, i32) {
    %c0_i32 = arith.constant 0 : i32
    %c0_i32_0 = arith.constant 0 : i32
    %c0_i32_1 = arith.constant 0 : i32
    return %c0_i32, %c0_i32_0 : i32, i32
  }
  func.func @transform_3(%arg0: i32) -> (i32, i32) {
    %c0_i32 = arith.constant 0 : i32
    %c0_i32_0 = arith.constant 0 : i32
    %c0_i32_1 = arith.constant 0 : i32
    return %c0_i32, %c0_i32_0 : i32, i32
  }
  func.func @transform_4(%arg0: i32) -> (i32, i32) {
    %c0_i32 = arith.constant 0 : i32
    %c0_i32_0 = arith.constant 0 : i32
    %c0_i32_1 = arith.constant 0 : i32
    return %c0_i32, %c0_i32_0 : i32, i32
  }
  func.func @transform_5(%arg0: i32) -> (i32, i32) {
    %c0_i32 = arith.constant 0 : i32
    %c0_i32_0 = arith.constant 0 : i32
    return %arg0, %c0_i32 : i32, i32
  }
}

</mosaic_0001>

<llo_original>
// kernel: tpu_custom_call.1
$region0: #{tpu_custom_call.1}
  #allocation0 [shape = 'u32[]', space=smem, size = 0x4, offset = 0x4, fixed_abs, tag = 'smem constant byte address 0x4 - core index']
  #allocation1 [shape = 'u32[72,128]{1,0:T(1,128)}', space=vmem, size = 0x9000, scoped, tag = 'internal scratch']
  #allocation2 [shape = 'f32[64,128]{1,0:T(8,128)}', space=vmem, size = 0x8000, scoped, tag = 'scratch operand']
  %s0 = inlined_call_operand.hbm [shape: bf16[64,128], index: 0, kind: input, shape index: {}]
  %s1 = inlined_call_operand.hbm [shape: bf16[128,128], index: 1, kind: input, shape index: {}]
  %s2 = inlined_call_operand.vmem [shape: f32[1,128], index: 2, kind: input, shape index: {}]
  %s3 = inlined_call_operand.hbm [shape: bf16[128,128], index: 3, kind: input, shape index: {}]
  %s4 = inlined_call_operand.vmem [shape: f32[1,128], index: 4, kind: input, shape index: {}]
  %s5 = inlined_call_operand.hbm [shape: f32[64,128], index: 5, kind: output, shape index: {}]
  %s6 = sld [smem:[#allocation0]]
  $region42: #{tpu_custom_call.1} parent=0
    _
  %s8 = ssub.s32 1, %s6
  %s9 = scalar_select 0, %s8, %s6
  $region1: #{tpu_custom_call.1} parent=0
    #allocation3 [shape = 'u8[16384]{0}', space=vmem, size = 0x4000, scoped, tag = 'input window, operand 0, single buffered']
    #allocation4 [shape = 's32[1]{0}', space=sflag, size = 0x4, scoped, tag = 'scoped memory for tpu_custom_call.1']
    #allocation5 [shape = 's32[1]{0}', space=sflag, size = 0x4, scoped, tag = 'scoped memory for tpu_custom_call.1']
    #allocation6 [shape = 'u8[32768]{0}', space=vmem, size = 0x8000, scoped, tag = 'input window, operand 1, single buffered']
    #allocation7 [shape = 's32[1]{0}', space=sflag, size = 0x4, scoped, tag = 'scoped memory for tpu_custom_call.1']
    #allocation8 [shape = 'u8[32768]{0}', space=vmem, size = 0x8000, scoped, tag = 'input window, operand 3, single buffered']
    #allocation9 [shape = 'u8[32768]{0}', space=vmem, size = 0x8000, scoped, tag = 'output window, operand 0, single buffered']
    %10 = vsyncpa [#allocation4], 0
    %11 = vsyncpa [#allocation7], 0
    %12 = vsyncpa [#allocation5], 0
    // Predicated region
    $region2: #{tpu_custom_call.1} parent=1 // pred_check
      _
    $region3: #{tpu_custom_call.1} parent=1 // pred_check_branch
      %14 = sbr.rel (0) target = $region5
    $region4: #{tpu_custom_call.1} parent=1 // pred_region
      %16 = vsyncadd [#allocation4], 0
      %s17 = sshll.u32 %s0, 4
      %s18 = int_to_ptr.hbm [resolvable:$true] %s17
      %s19 = sshll.u32 [#allocation3], 4
      %s20 = int_to_ptr.vmem [resolvable:$true] %s19
      %25 = dma.hbm_to_vmem [thread:$0]  %s18, 512, %s20, [#allocation4], 64, 64, 4
    $region5: #{tpu_custom_call.1} parent=1 // pred_fallthru
      _
    // Predicated region
    $region6: #{tpu_custom_call.1} parent=1 // pred_check
      _
    $region7: #{tpu_custom_call.1} parent=1 // pred_check_branch
      %27 = sbr.rel (0) target = $region9
    $region8: #{tpu_custom_call.1} parent=1 // pred_region
      %29 = vsyncadd [#allocation7], 0
      %s30 = sshll.u32 %s1, 4
      %s31 = int_to_ptr.hbm [resolvable:$true] %s30
      %s32 = sshll.u32 [#allocation6], 4
      %s33 = int_to_ptr.vmem [resolvable:$true] %s32
      %38 = dma.hbm_to_vmem [thread:$0]  %s31, 1024, %s33, [#allocation7], 64, 64, 4
    $region9: #{tpu_custom_call.1} parent=1 // pred_fallthru
      _
    // Predicated region
    $region10: #{tpu_custom_call.1} parent=1 // pred_check
      _
    $region11: #{tpu_custom_call.1} parent=1 // pred_check_branch
      %40 = sbr.rel (0) target = $region13
    $region12: #{tpu_custom_call.1} parent=1 // pred_region
      _
    $region13: #{tpu_custom_call.1} parent=1 // pred_fallthru
      _
    // Predicated region
    $region14: #{tpu_custom_call.1} parent=1 // pred_check
      _
    $region15: #{tpu_custom_call.1} parent=1 // pred_check_branch
      %42 = sbr.rel (0) target = $region17
    $region16: #{tpu_custom_call.1} parent=1 // pred_region
      %44 = vsyncadd [#allocation7], 0
      %s45 = sshll.u32 %s3, 4
      %s46 = int_to_ptr.hbm [resolvable:$true] %s45
      %s47 = sshll.u32 [#allocation8], 4
      %s48 = int_to_ptr.vmem [resolvable:$true] %s47
      %53 = dma.hbm_to_vmem [thread:$0]  %s46, 1024, %s48, [#allocation7], 64, 64, 4
    $region17: #{tpu_custom_call.1} parent=1 // pred_fallthru
      _
    // Predicated region
    $region18: #{tpu_custom_call.1} parent=1 // pred_check
      _
    $region19: #{tpu_custom_call.1} parent=1 // pred_check_branch
      %55 = sbr.rel (0) target = $region21
    $region20: #{tpu_custom_call.1} parent=1 // pred_region
      _
    $region21: #{tpu_custom_call.1} parent=1 // pred_fallthru
      _
    // Predicated region
    $region22: #{tpu_custom_call.1} parent=1 // pred_check
      _
    $region23: #{tpu_custom_call.1} parent=1 // pred_check_branch
      %57 = sbr.rel (0) target = $region25
    $region24: #{tpu_custom_call.1} parent=1 // pred_region
      %59 = dma.done [#allocation4], 512
    $region25: #{tpu_custom_call.1} parent=1 // pred_fallthru
      _
    // Predicated region
    $region26: #{tpu_custom_call.1} parent=1 // pred_check
      _
    $region27: #{tpu_custom_call.1} parent=1 // pred_check_branch
      %61 = sbr.rel (0) target = $region29
    $region28: #{tpu_custom_call.1} parent=1 // pred_region
      %63 = dma.done [#allocation7], 1024
    $region29: #{tpu_custom_call.1} parent=1 // pred_fallthru
      _
    // Predicated region
    $region30: #{tpu_custom_call.1} parent=1 // pred_check
      _
    $region31: #{tpu_custom_call.1} parent=1 // pred_check_branch
      %65 = sbr.rel (0) target = $region33
    $region32: #{tpu_custom_call.1} parent=1 // pred_region
      %67 = dma.done [#allocation7], 1024
    $region33: #{tpu_custom_call.1} parent=1 // pred_fallthru
      _
    %v68 = vld [vmem:[#allocation3] sm:$0xf]
    %v69 = vld [vmem:[#allocation3 + $0x4] sm:$0xf]
    %v70 = vld [vmem:[#allocation3 + $0x8] sm:$0xf]
    %v71 = vld [vmem:[#allocation3 + $0xc] sm:$0xf]
    %v72 = vld [vmem:[#allocation3 + $0x10] sm:$0xf]
    %v73 = vld [vmem:[#allocation3 + $0x14] sm:$0xf]
    %v74 = vld [vmem:[#allocation3 + $0x18] sm:$0xf]
    %v75 = vld [vmem:[#allocation3 + $0x1c] sm:$0xf]
    %v76 = vld [vmem:[#allocation6] sm:$0xf]
    %v77 = vld [vmem:[#allocation6 + $0x4] sm:$0xf]
    %v78 = vld [vmem:[#allocation6 + $0x8] sm:$0xf]
    %v79 = vld [vmem:[#allocation6 + $0xc] sm:$0xf]
    %v80 = vld [vmem:[#allocation6 + $0x10] sm:$0xf]
    %v81 = vld [vmem:[#allocation6 + $0x14] sm:$0xf]
    %v82 = vld [vmem:[#allocation6 + $0x18] sm:$0xf]
    %v83 = vld [vmem:[#allocation6 + $0x1c] sm:$0xf]
    %v84 = vld [vmem:[#allocation6 + $0x20] sm:$0xf]
    %v85 = vld [vmem:[#allocation6 + $0x24] sm:$0xf]
    %v86 = vld [vmem:[#allocation6 + $0x28] sm:$0xf]
    %v87 = vld [vmem:[#allocation6 + $0x2c] sm:$0xf]
    %v88 = vld [vmem:[#allocation6 + $0x30] sm:$0xf]
    %v89 = vld [vmem:[#allocation6 + $0x34] sm:$0xf]
    %v90 = vld [vmem:[#allocation6 + $0x38] sm:$0xf]
    %v91 = vld [vmem:[#allocation6 + $0x3c] sm:$0xf]
    %v92 = vld [vmem:[%s2] sm:$0x1]
    %v94 = vperm.slane %v92, 0
    %v104 = vunpack.c.l.b16 %v68
    %v105 = vunpack.c.l.b16 %v69
    %v106 = vunpack.c.l.b16 %v70
    %v107 = vunpack.c.l.b16 %v71
    %v108 = vunpack.c.l.b16 %v72
    %v109 = vunpack.c.l.b16 %v73
    %v110 = vunpack.c.l.b16 %v74
    %v111 = vunpack.c.l.b16 %v75
    %v112 = vpack.c.b16 %v105, %v104
    %v113 = vpack.c.b16 %v107, %v106
    %v114 = vpack.c.b16 %v109, %v108
    %v115 = vpack.c.b16 %v111, %v110
    %v136 = vunpack.c.l.b16 %v76
    %v137 = vunpack.c.l.b16 %v77
    %v138 = vunpack.c.l.b16 %v78
    %v139 = vunpack.c.l.b16 %v79
    %v140 = vunpack.c.l.b16 %v80
    %v141 = vunpack.c.l.b16 %v81
    %v142 = vunpack.c.l.b16 %v82
    %v143 = vunpack.c.l.b16 %v83
    %v144 = vunpack.c.l.b16 %v84
    %v145 = vunpack.c.l.b16 %v85
    %v146 = vunpack.c.l.b16 %v86
    %v147 = vunpack.c.l.b16 %v87
    %v148 = vunpack.c.l.b16 %v88
    %v149 = vunpack.c.l.b16 %v89
    %v150 = vunpack.c.l.b16 %v90
    %v151 = vunpack.c.l.b16 %v91
    %v152 = vpack.c.b16 %v137, %v136
    %v153 = vpack.c.b16 %v139, %v138
    %v154 = vpack.c.b16 %v141, %v140
    %v155 = vpack.c.b16 %v143, %v142
    %v156 = vpack.c.b16 %v145, %v144
    %v157 = vpack.c.b16 %v147, %v146
    %v158 = vpack.c.b16 %v149, %v148
    %v159 = vpack.c.b16 %v151, %v150
    %168 = vmatpush.bf16.msra.mxu0 %v159
    %169 = vmatpush.bf16.msra.mxu0 %v158
    %170 = vmatpush.bf16.msra.mxu0 %v157
    %171 = vmatpush.bf16.msra.mxu0 %v156
    %172 = vmatpush.bf16.msra.mxu0 %v155
    %173 = vmatpush.bf16.msra.mxu0 %v154
    %174 = vmatpush.bf16.msra.mxu0 %v153
    %175 = vmatpush.bf16.msra.mxu0 %v152
    %176 = vmatmul.bf16.gmra.mxu0 %v112
    %v177 = vpop.f32.mrf.mxu0
    %v178 = vadd.f32 %v94, %v177
    %v179 = vpop.f32.mrf.mxu0
    %v180 = vadd.f32 %v94, %v179
    %181 = vmatmul.bf16.gmra.mxu0 %v113
    %v182 = vpop.f32.mrf.mxu0
    %v183 = vadd.f32 %v94, %v182
    %v184 = vpop.f32.mrf.mxu0
    %v185 = vadd.f32 %v94, %v184
    %186 = vmatmul.bf16.gmra.mxu0 %v114
    %v187 = vpop.f32.mrf.mxu0
    %v188 = vadd.f32 %v94, %v187
    %v189 = vpop.f32.mrf.mxu0
    %v190 = vadd.f32 %v94, %v189
    %191 = vmatmul.bf16.gmra.mxu0 %v115
    %v192 = vpop.f32.mrf.mxu0
    %v193 = vadd.f32 %v94, %v192
    %v194 = vpop.f32.mrf.mxu0
    %v195 = vadd.f32 %v94, %v194
    %196 = vdwg.mxu0
    %197 = vst [vmem:[#allocation2] sm:$0xff] %v178
    %198 = vst [vmem:[#allocation2 + $0x8] sm:$0xff] %v180
    %199 = vst [vmem:[#allocation2 + $0x10] sm:$0xff] %v183
    %200 = vst [vmem:[#allocation2 + $0x18] sm:$0xff] %v185
    %201 = vst [vmem:[#allocation2 + $0x20] sm:$0xff] %v188
    %202 = vst [vmem:[#allocation2 + $0x28] sm:$0xff] %v190
    %203 = vst [vmem:[#allocation2 + $0x30] sm:$0xff] %v193
    %204 = vst [vmem:[#allocation2 + $0x38] sm:$0xff] %v195
    %v205 = vld [vmem:[#allocation2] sm:$0xff]
    %v206 = vld [vmem:[#allocation2 + $0x8] sm:$0xff]
    %v207 = vld [vmem:[#allocation2 + $0x10] sm:$0xff]
    %v208 = vld [vmem:[#allocation2 + $0x18] sm:$0xff]
    %v209 = vld [vmem:[#allocation2 + $0x20] sm:$0xff]
    %v210 = vld [vmem:[#allocation2 + $0x28] sm:$0xff]
    %v211 = vld [vmem:[#allocation2 + $0x30] sm:$0xff]
    %v212 = vld [vmem:[#allocation2 + $0x38] sm:$0xff]
    %v213 = vpack.c.bf16 %v206, %v205
    %v214 = vpack.c.bf16 %v208, %v207
    %v215 = vpack.c.bf16 %v210, %v209
    %v216 = vpack.c.bf16 %v212, %v211
    %v217 = vld [vmem:[#allocation8] sm:$0xf]
    %v218 = vld [vmem:[#allocation8 + $0x4] sm:$0xf]
    %v219 = vld [vmem:[#allocation8 + $0x8] sm:$0xf]
    %v220 = vld [vmem:[#allocation8 + $0xc] sm:$0xf]
    %v221 = vld [vmem:[#allocation8 + $0x10] sm:$0xf]
    %v222 = vld [vmem:[#allocation8 + $0x14] sm:$0xf]
    %v223 = vld [vmem:[#allocation8 + $0x18] sm:$0xf]
    %v224 = vld [vmem:[#allocation8 + $0x1c] sm:$0xf]
    %v225 = vld [vmem:[#allocation8 + $0x20] sm:$0xf]
    %v226 = vld [vmem:[#allocation8 + $0x24] sm:$0xf]
    %v227 = vld [vmem:[#allocation8 + $0x28] sm:$0xf]
    %v228 = vld [vmem:[#allocation8 + $0x2c] sm:$0xf]
    %v229 = vld [vmem:[#allocation8 + $0x30] sm:$0xf]
    %v230 = vld [vmem:[#allocation8 + $0x34] sm:$0xf]
    %v231 = vld [vmem:[#allocation8 + $0x38] sm:$0xf]
    %v232 = vld [vmem:[#allocation8 + $0x3c] sm:$0xf]
    %v233 = vld [vmem:[%s4] sm:$0x1]
    %v235 = vperm.slane %v233, 0
    %v253 = vunpack.c.l.b16 %v217
    %v254 = vunpack.c.l.b16 %v218
    %v255 = vunpack.c.l.b16 %v219
    %v256 = vunpack.c.l.b16 %v220
    %v257 = vunpack.c.l.b16 %v221
    %v258 = vunpack.c.l.b16 %v222
    %v259 = vunpack.c.l.b16 %v223
    %v260 = vunpack.c.l.b16 %v224
    %v261 = vunpack.c.l.b16 %v225
    %v262 = vunpack.c.l.b16 %v226
    %v263 = vunpack.c.l.b16 %v227
    %v264 = vunpack.c.l.b16 %v228
    %v265 = vunpack.c.l.b16 %v229
    %v266 = vunpack.c.l.b16 %v230
    %v267 = vunpack.c.l.b16 %v231
    %v268 = vunpack.c.l.b16 %v232
    %v269 = vpack.c.b16 %v254, %v253
    %v270 = vpack.c.b16 %v256, %v255
    %v271 = vpack.c.b16 %v258, %v257
    %v272 = vpack.c.b16 %v260, %v259
    %v273 = vpack.c.b16 %v262, %v261
    %v274 = vpack.c.b16 %v264, %v263
    %v275 = vpack.c.b16 %v266, %v265
    %v276 = vpack.c.b16 %v268, %v267
    %285 = vmatpush.bf16.msra.mxu0 %v276
    %286 = vmatpush.bf16.msra.mxu0 %v275
    %287 = vmatpush.bf16.msra.mxu0 %v274
    %288 = vmatpush.bf16.msra.mxu0 %v273
    %289 = vmatpush.bf16.msra.mxu0 %v272
    %290 = vmatpush.bf16.msra.mxu0 %v271
    %291 = vmatpush.bf16.msra.mxu0 %v270
    %292 = vmatpush.bf16.msra.mxu0 %v269
    %293 = vmatmul.bf16.gmra.mxu0 %v213
    %v294 = vpop.f32.mrf.mxu0
    %v295 = vadd.f32 %v235, %v294
    %v296 = vpop.f32.mrf.mxu0
    %v297 = vadd.f32 %v235, %v296
    %298 = vmatmul.bf16.gmra.mxu0 %v214
    %v299 = vpop.f32.mrf.mxu0
    %v300 = vadd.f32 %v235, %v299
    %v301 = vpop.f32.mrf.mxu0
    %v302 = vadd.f32 %v235, %v301
    %303 = vmatmul.bf16.gmra.mxu0 %v215
    %v304 = vpop.f32.mrf.mxu0
    %v305 = vadd.f32 %v235, %v304
    %v306 = vpop.f32.mrf.mxu0
    %v307 = vadd.f32 %v235, %v306
    %308 = vmatmul.bf16.gmra.mxu0 %v216
    %v309 = vpop.f32.mrf.mxu0
    %v310 = vadd.f32 %v235, %v309
    %v311 = vpop.f32.mrf.mxu0
    %v312 = vadd.f32 %v235, %v311
    %313 = vdwg.mxu0
    %314 = vst [vmem:[#allocation9] sm:$0xff] %v295
    %315 = vst [vmem:[#allocation9 + $0x8] sm:$0xff] %v297
    %316 = vst [vmem:[#allocation9 + $0x10] sm:$0xff] %v300
    %317 = vst [vmem:[#allocation9 + $0x18] sm:$0xff] %v302
    %318 = vst [vmem:[#allocation9 + $0x20] sm:$0xff] %v305
    %319 = vst [vmem:[#allocation9 + $0x28] sm:$0xff] %v307
    %320 = vst [vmem:[#allocation9 + $0x30] sm:$0xff] %v310
    %321 = vst [vmem:[#allocation9 + $0x38] sm:$0xff] %v312
    // Predicated region
    $region34: #{tpu_custom_call.1} parent=1 // pred_check
      _
    $region35: #{tpu_custom_call.1} parent=1 // pred_check_branch
      %323 = sbr.rel (0) target = $region37
    $region36: #{tpu_custom_call.1} parent=1 // pred_region
      %325 = vsyncadd [#allocation5], 0
      %s326 = sshll.u32 [#allocation9], 4
      %s327 = int_to_ptr.vmem [resolvable:$true] %s326
      %s328 = sshll.u32 %s5, 4
      %s329 = int_to_ptr.hbm [resolvable:$true] %s328
      %334 = dma.vmem_to_hbm [thread:$0]  %s327, 1024, %s329, [#allocation5], 128, 128, 8
    $region37: #{tpu_custom_call.1} parent=1 // pred_fallthru
      _
    // Predicated region
    $region38: #{tpu_custom_call.1} parent=1 // pred_check
      _
    $region39: #{tpu_custom_call.1} parent=1 // pred_check_branch
      %336 = sbr.rel (0) target = $region41
    $region40: #{tpu_custom_call.1} parent=1 // pred_region
      %338 = dma.done [#allocation5], 1024
    $region41: #{tpu_custom_call.1} parent=1 // pred_fallthru
      _
    %339 = vsyncpa [#allocation4], 1
    %340 = vsyncpa [#allocation7], 1
    %341 = vsyncpa [#allocation5], 1

</llo_original>
